<compile_context>
chip_gen: v5e
topology: v5e:2x2
jax: 0.10.0
libtpu: 0.0.40
codegen_flags: <defaults>
</compile_context>

<pallas_src>
import functools

import jax
import jax.numpy as jnp
from jax import lax
from jax.experimental import pallas as pl
from jax.experimental.pallas import tpu as pltpu


def _gap1d_kernel(x_ref, o_ref, acc_ref, *, inv_l, l_total, tl, lane_accum):
    # x_ref:   (TB, TC, TL)          current batch-tile x channel-tile x length-chunk
    # o_ref:   (TB, TC)              output tile (revisited across the L axis)
    # acc_ref: (TB, TC, 128) f32     lane-preserving running sum   (lane_accum=True)
    #          (TB, TC)       f32    plain running sum             (lane_accum=False)
    k = pl.program_id(2)

    @pl.when(k == 0)
    def _():
        acc_ref[...] = jnp.zeros_like(acc_ref)

    if lane_accum:
        # TL is a multiple of 128: accumulate 128-lane slices with elementwise
        # VPU adds (no per-step XLU reduce).
        n_slices = tl // 128
        n_steps = (l_total + tl - 1) // tl          # static
        needs_mask = (l_total % tl) != 0            # static

        def accumulate(masked):
            lane = None
            if masked:
                # Hoisted out of the slice loop (JAX does not CSE iota/broadcast).
                lane = lax.broadcasted_iota(
                    jnp.int32, (x_ref.shape[0], x_ref.shape[1], 128), 2)
            base = k * tl
            for s in range(n_slices):               # static unroll
                chunk = x_ref[:, :, pl.ds(s * 128, 128)].astype(jnp.float32)
                if masked:
                    # zero lanes whose global index >= L (tail garbage)
                    chunk = jnp.where(lane < (l_total - base - s * 128), chunk, 0.0)
                acc_ref[...] += chunk

        if not needs_mask:
            accumulate(False)
        elif n_steps == 1:
            accumulate(True)
        else:
            # Mask only the last reduction step; all earlier chunks are full.
            @pl.when(k < n_steps - 1)
            def _():
                accumulate(False)

            @pl.when(k == n_steps - 1)
            def _():
                accumulate(True)
    else:
        # Tiny-L path (L < 128, single step, full extent): one small XLU reduce.
        acc_ref[...] += jnp.sum(x_ref[...], axis=-1, dtype=jnp.float32)

    @pl.when(k == pl.num_programs(2) - 1)
    def _():
        if lane_accum:
            total = jnp.sum(acc_ref[...], axis=-1)  # one cross-lane reduce per block
        else:
            total = acc_ref[...]
        # One multiply by the precomputed 1/L at finalize, then cast to output dtype.
        o_ref[...] = (total * inv_l).astype(o_ref.dtype)


def gap1d(
    x: jax.Array,
    output_size: int = 1,
    *,
    max_lane_tile: int | None = None,
    max_channel_tile: int | None = None,
) -> jax.Array:
    """GAP1d forward: (N, C, L) -> (N, C * output_size).

    Only output_size=1 (the module default) is implemented in-kernel, which is
    GAP1d's standard use (global average pooling + flatten).
    """
    if output_size != 1:
        # TODO(synk): general AdaptiveAvgPool1d(output_size>1) window math not implemented.
        raise NotImplementedError("GAP1d Pallas kernel supports output_size=1 only")

    N, C, L = x.shape
    itemsize = jnp.dtype(x.dtype).itemsize

    # Batch tile: 8 rows keeps the output block sublane-aligned and leaves >=2
    # "parallel" batch blocks for v7x's two TensorCores at moderate N; only go
    # to 16 for 16-bit dtypes when N is large enough to still give >=2 blocks.
    TB = 16 if (itemsize <= 2 and N >= 32) else 8

    # Channel tile: full C unless the (TB, TC, 128) f32 accumulator would exceed
    # ~2 MiB; then tile C in multiples of 128 (required so the output block's
    # last dim stays lane-aligned).
    ACC_BUDGET = 2 * 1024 * 1024
    tc_max = max(128, (ACC_BUDGET // (TB * 128 * 4)) // 128 * 128)
    if max_channel_tile is not None:
        tc_max = min(tc_max, max(128, (max_channel_tile // 128) * 128))
    TC = C if C <= tc_max else tc_max

    # Length tile: ~4 MiB per input buffer (double-buffered by the pipeline),
    # multiples of 128 lanes, and a cap on the unrolled 128-lane slice count.
    # Because TC is capped above, even the 128-lane floor stays within budget.
    IN_BUDGET = 4 * 1024 * 1024
    MAX_SLICES = 64
    if L < 128:
        TL = L                       # full extent: (8,128) rule satisfied by "equals dim"
        lane_accum = False
    else:
        tl_cap = (IN_BUDGET // max(1, TB * TC * itemsize)) // 128 * 128
        tl_cap = max(128, min(tl_cap, MAX_SLICES * 128))
        if max_lane_tile is not None:
            tl_cap = max(128, min(tl_cap, (max_lane_tile // 128) * 128))
        TL = min(tl_cap, pl.cdiv(L, 128) * 128)
        lane_accum = True

    grid = (pl.cdiv(N, TB), pl.cdiv(C, TC), pl.cdiv(L, TL))

    acc_spec = (
        pltpu.VMEM((TB, TC, 128), jnp.float32)
        if lane_accum
        else pltpu.VMEM((TB, TC), jnp.float32)
    )

    out = pl.pallas_call(
        functools.partial(
            _gap1d_kernel,
            inv_l=float(1.0 / L),
            l_total=L,
            tl=TL,
            lane_accum=lane_accum,
        ),
        out_shape=jax.ShapeDtypeStruct((N, C), x.dtype),
        grid_spec=pltpu.PrefetchScalarGridSpec(
            num_scalar_prefetch=0,
            grid=grid,
            in_specs=[
                pl.BlockSpec((TB, TC, TL), lambda i, j, k: (i, j, k)),
            ],
            # Same output block revisited across the reduction axis k (accumulator).
            out_specs=pl.BlockSpec((TB, TC), lambda i, j, k: (i, j)),
            scratch_shapes=[acc_spec],
        ),
        compiler_params=pltpu.CompilerParams(
            # Batch/channel axes shard across TensorCores (v7x megacore); the
            # reduction axis MUST stay last and "arbitrary" (output block is
            # revisited across it).
            dimension_semantics=("parallel", "parallel", "arbitrary"),
        ),
    )(x)

    return out


def gap1d_ref(x: jax.Array) -> jax.Array:
    """Pure-JAX reference of the PyTorch forward."""
    return jnp.mean(x.astype(jnp.float32), axis=-1).astype(x.dtype)


if __name__ == "__main__":
    key = jax.random.PRNGKey(0)
    keys = jax.random.split(key, 4)

    # 1) Small canonical shape (single block, tiny-L direct-sum path).
    N, C, L = 2, 4, 16
    x = jax.random.normal(keys[0], (N, C, L), dtype=jnp.float32)
    out = gap1d(x)
    jax.block_until_ready(out)
    assert out.shape == (N, C), out.shape
    assert jnp.allclose(out, gap1d_ref(x), atol=1e-5, rtol=1e-5)

    # 2) Multi-step L reduction with masked tail + partial batch block (no padding).
    x2 = jax.random.normal(keys[1], (10, 8, 300), dtype=jnp.float32)
    out2 = gap1d(x2, max_lane_tile=128)   # TL=128 -> 3 reduction steps, last masked
    jax.block_until_ready(out2)
    assert out2.shape == (10, 8), out2.shape
    assert jnp.allclose(out2, gap1d_ref(x2), atol=1e-5, rtol=1e-5)

    # 3) Channel tiling with partial channel block + masked L tail.
    x3 = jax.random.normal(keys[2], (4, 200, 200), dtype=jnp.float32)
    out3 = gap1d(x3, max_channel_tile=128)  # TC=128 -> 2 channel blocks (last partial)
    jax.block_until_ready(out3)
    assert out3.shape == (4, 200), out3.shape
    assert jnp.allclose(out3, gap1d_ref(x3), atol=1e-5, rtol=1e-5)

    # 4) bf16 input (f32 accumulation in-kernel), masked single-step lane path.
    x4 = jax.random.normal(keys[3], (16, 32, 260), dtype=jnp.bfloat16)
    out4 = gap1d(x4)
    jax.block_until_ready(out4)
    assert out4.shape == (16, 32), out4.shape
    assert jnp.allclose(
        out4.astype(jnp.float32), gap1d_ref(x4).astype(jnp.float32),
        atol=1e-2, rtol=1e-2)

    print("KERNEL_OK")
</pallas_src>

<mosaic_0001>
module attributes {stable_mosaic.version = 11 : i64} {
  func.func @_gap1d_kernel(%arg0: i32, %arg1: i32, %arg2: i32, %arg3: memref<8x4x16xf32, #tpu.memory_space<vmem>>, %arg4: memref<8x4xf32, #tpu.memory_space<vmem>>, %arg5: memref<8x4xf32, #tpu.memory_space<vmem>>) attributes {dimension_semantics = [#tpu.dimension_semantics<parallel>, #tpu.dimension_semantics<parallel>, #tpu.dimension_semantics<arbitrary>], iteration_bounds = array<i64: 1, 1, 1>, scalar_prefetch = 0 : i64, scratch_operands = 1 : i64, tpu.core_type = #tpu.core_type<tc>, window_params = [{transform_indices = @transform_0, window_bounds = array<i64: 8, 4, 16>}, {transform_indices = @transform_1, window_bounds = array<i64: 8, 4>}]} {
    %c0_i32 = arith.constant 0 : i32
    %0 = arith.cmpi eq, %arg2, %c0_i32 : i32
    %1 = arith.extui %0 : i1 to i32
    %c0_i32_0 = arith.constant 0 : i32
    %2 = arith.cmpi ne, %1, %c0_i32_0 : i32
    scf.if %2 {
      %cst_9 = arith.constant 0.000000e+00 : f32
      %11 = vector.broadcast %cst_9 : f32 to vector<8x4xf32>
      %c0_10 = arith.constant 0 : index
      %c0_11 = arith.constant 0 : index
      %12 = vector.load %arg5[%c0_10, %c0_11] : memref<8x4xf32, #tpu.memory_space<vmem>>, vector<8x4xf32>
      tpu.vector_store %arg5[%c0_10, %c0_11], %11 {strides = array<i32>} : memref<8x4xf32, #tpu.memory_space<vmem>>, vector<8x4xf32>,
    } else {
    }
    %c0 = arith.constant 0 : index
    %c0_1 = arith.constant 0 : index
    %3 = vector.load %arg5[%c0, %c0_1] : memref<8x4xf32, #tpu.memory_space<vmem>>, vector<8x4xf32>
    %c0_2 = arith.constant 0 : index
    %c0_3 = arith.constant 0 : index
    %c0_4 = arith.constant 0 : index
    %4 = vector.load %arg3[%c0_2, %c0_3, %c0_4] : memref<8x4x16xf32, #tpu.memory_space<vmem>>, vector<8x4x16xf32>
    %cst = arith.constant dense<0.000000e+00> : vector<8x4xf32>
    %5 = vector.multi_reduction <add>, %4, %cst [2] : vector<8x4x16xf32> to vector<8x4xf32>
    %6 = arith.addf %3, %5 : vector<8x4xf32>
    %c0_5 = arith.constant 0 : index
    %c0_6 = arith.constant 0 : index
    %7 = vector.load %arg5[%c0_5, %c0_6] : memref<8x4xf32, #tpu.memory_space<vmem>>, vector<8x4xf32>
    tpu.vector_store %arg5[%c0_5, %c0_6], %6 {strides = array<i32>} : memref<8x4xf32, #tpu.memory_space<vmem>>, vector<8x4xf32>,
    %c0_i32_7 = arith.constant 0 : i32
    %8 = arith.cmpi eq, %arg2, %c0_i32_7 : i32
    %9 = arith.extui %8 : i1 to i32
    %c0_i32_8 = arith.constant 0 : i32
    %10 = arith.cmpi ne, %9, %c0_i32_8 : i32
    scf.if %10 {
      %c0_9 = arith.constant 0 : index
      %c0_10 = arith.constant 0 : index
      %11 = vector.load %arg5[%c0_9, %c0_10] : memref<8x4xf32, #tpu.memory_space<vmem>>, vector<8x4xf32>
      %cst_11 = arith.constant 6.250000e-02 : f32
      %12 = vector.broadcast %cst_11 : f32 to vector<8x4xf32>
      %13 = arith.mulf %11, %12 : vector<8x4xf32>
      %c0_12 = arith.constant 0 : index
      %c0_13 = arith.constant 0 : index
      %14 = vector.load %arg4[%c0_12, %c0_13] : memref<8x4xf32, #tpu.memory_space<vmem>>, vector<8x4xf32>
      tpu.vector_store %arg4[%c0_12, %c0_13], %13 {strides = array<i32>} : memref<8x4xf32, #tpu.memory_space<vmem>>, vector<8x4xf32>,
    } else {
    }
    return
  }
  func.func @transform_0(%arg0: i32, %arg1: i32, %arg2: i32) -> (i32, i32, i32) {
    %c0_i32 = arith.constant 0 : i32
    return %arg0, %arg1, %arg2 : i32, i32, i32
  }
  func.func @transform_1(%arg0: i32, %arg1: i32, %arg2: i32) -> (i32, i32) {
    %c0_i32 = arith.constant 0 : i32
    return %arg0, %arg1 : i32, i32
  }
}

</mosaic_0001>

<llo_original>
// kernel: tpu_custom_call.1
$region0: #{tpu_custom_call.1}
  #allocation0 [shape = 'u32[]', space=smem, size = 0x4, offset = 0x4, fixed_abs, tag = 'smem constant byte address 0x4 - core index']
  #allocation1 [shape = 'u32[72,128]{1,0:T(1,128)}', space=vmem, size = 0x9000, scoped, tag = 'internal scratch']
  #allocation2 [shape = 'f32[8,4]{1,0:T(8,128)}', space=vmem, size = 0x1000, scoped, tag = 'scratch operand']
  %s0 = inlined_call_operand.hbm [shape: f32[2,4,16], index: 0, kind: input, shape index: {}]
  %s1 = inlined_call_operand.hbm [shape: f32[2,4], index: 1, kind: output, shape index: {}]
  %s2 = sld [smem:[#allocation0]]
  $region26: #{tpu_custom_call.1} parent=0
    _
  %s4 = ssub.s32 1, %s2
  %s5 = scalar_select 0, %s4, %s2
  $region1: #{tpu_custom_call.1} parent=0
    #allocation3 [shape = 'u8[16384]{0}', space=vmem, size = 0x4000, scoped, tag = 'input window, operand 0, single buffered']
    #allocation4 [shape = 's32[1]{0}', space=sflag, size = 0x4, scoped, tag = 'scoped memory for tpu_custom_call.1']
    #allocation5 [shape = 's32[1]{0}', space=sflag, size = 0x4, scoped, tag = 'scoped memory for tpu_custom_call.1']
    #allocation6 [shape = 'u8[4096]{0}', space=vmem, size = 0x1000, scoped, tag = 'output window, operand 0, single buffered']
    %6 = vsyncpa [#allocation4], 0
    %7 = vsyncpa [#allocation5], 0
    // Predicated region
    $region2: #{tpu_custom_call.1} parent=1 // pred_check
      _
    $region3: #{tpu_custom_call.1} parent=1 // pred_check_branch
      %9 = sbr.rel (0) target = $region5
    $region4: #{tpu_custom_call.1} parent=1 // pred_region
      %11 = vsyncadd [#allocation4], 384
      %s12 = sshll.u32 %s0, 4
      %s13 = int_to_ptr.hbm [resolvable:$true] %s12
      %s14 = sshll.u32 [#allocation3], 4
      %s15 = int_to_ptr.vmem [resolvable:$true] %s14
      %20 = dma.hbm_to_vmem [thread:$0]  %s13, 128, %s15, [#allocation4], 64, 64, 4
    $region5: #{tpu_custom_call.1} parent=1 // pred_fallthru
      _
    // Predicated region
    $region6: #{tpu_custom_call.1} parent=1 // pred_check
      _
    $region7: #{tpu_custom_call.1} parent=1 // pred_check_branch
      %22 = sbr.rel (0) target = $region9
    $region8: #{tpu_custom_call.1} parent=1 // pred_region
      %24 = dma.done [#allocation4], 512
    $region9: #{tpu_custom_call.1} parent=1 // pred_fallthru
      _
    %p25 = scmp.eq.s32.totalorder 0, 0
    // Predicated region
    $region10: #{tpu_custom_call.1} parent=1 // pred_check
      %p26 = pneg %p25
    $region11: #{tpu_custom_call.1} parent=1 // pred_check_branch
      %28 = sbr.rel (%p26) target = $region13
    $region12: #{tpu_custom_call.1} parent=1 // pred_region
      %vm29 = vcmask 31744
      %30 = vst.msk [vmem:[#allocation2] sm:$0xff] %vm29, 0.0
    $region13: #{tpu_custom_call.1} parent=1 // pred_fallthru
      _
    %v31 = vld [vmem:[#allocation2] sm:$0xff]
    %v32 = vld [vmem:[#allocation3] sm:$0xf]
    %v33 = vld [vmem:[#allocation3 + $0x4] sm:$0xf]
    %v34 = vld [vmem:[#allocation3 + $0x8] sm:$0xf]
    %v35 = vld [vmem:[#allocation3 + $0xc] sm:$0xf]
    %v36 = vld [vmem:[#allocation3 + $0x10] sm:$0xf]
    %v37 = vld [vmem:[#allocation3 + $0x14] sm:$0xf]
    %v38 = vld [vmem:[#allocation3 + $0x18] sm:$0xf]
    %v39 = vld [vmem:[#allocation3 + $0x1c] sm:$0xf]
    %vm40 = vcmask 125952
    %v41 = vsel %vm40, %v32, 0.0
    %42 = vadd.xlane.f32.xlu0 %v41
    %v43 = vpop.xlane.xlu0 %42
    %v44 = vsel %vm40, %v33, 0.0
    %45 = vadd.xlane.f32.xlu0 %v44
    %v46 = vpop.xlane.xlu0 %45
    %v47 = vsel %vm40, %v34, 0.0
    %48 = vadd.xlane.f32.xlu0 %v47
    %v49 = vpop.xlane.xlu0 %48
    %v50 = vsel %vm40, %v35, 0.0
    %51 = vadd.xlane.f32.xlu0 %v50
    %v52 = vpop.xlane.xlu0 %51
    %v53 = vsel %vm40, %v36, 0.0
    %54 = vadd.xlane.f32.xlu0 %v53
    %v55 = vpop.xlane.xlu0 %54
    %v56 = vsel %vm40, %v37, 0.0
    %57 = vadd.xlane.f32.xlu0 %v56
    %v58 = vpop.xlane.xlu0 %57
    %v59 = vsel %vm40, %v38, 0.0
    %60 = vadd.xlane.f32.xlu0 %v59
    %v61 = vpop.xlane.xlu0 %60
    %v62 = vsel %vm40, %v39, 0.0
    %63 = vadd.xlane.f32.xlu0 %v62
    %v64 = vpop.xlane.xlu0 %63
    %v73 = vlaneseq
    %v74 = vand.u32 %v73, 127
    %v75 = vperm.slane %v43, %v74
    %v76 = vperm.slane %v46, %v74
    %v77 = vperm.slane %v49, %v74
    %v78 = vperm.slane %v52, %v74
    %v79 = vperm.slane %v55, %v74
    %v80 = vperm.slane %v58, %v74
    %v81 = vperm.slane %v61, %v74
    %v82 = vperm.slane %v64, %v74
    %vm83 = vcmask 1041409
    %v84 = vsel %vm83, %v76, %v75
    %vm85 = vcmask 1042434
    %v86 = vsel %vm85, %v77, %v84
    %vm87 = vcmask 1043459
    %v88 = vsel %vm87, %v78, %v86
    %vm89 = vcmask 1044484
    %v90 = vsel %vm89, %v79, %v88
    %vm91 = vcmask 1045509
    %v92 = vsel %vm91, %v80, %v90
    %vm93 = vcmask 1046534
    %v94 = vsel %vm93, %v81, %v92
    %vm95 = vcmask 1047559
    %v96 = vsel %vm95, %v82, %v94
    %v98 = vadd.f32 %v31, %v96
    %vm99 = vcmask 31744
    %100 = vst.msk [vmem:[#allocation2] sm:$0xff] %vm99, %v98
    // Predicated region
    $region14: #{tpu_custom_call.1} parent=1 // pred_check
      %p101 = pneg %p25
    $region15: #{tpu_custom_call.1} parent=1 // pred_check_branch
      %103 = sbr.rel (%p101) target = $region17
    $region16: #{tpu_custom_call.1} parent=1 // pred_region
      %v104 = vld [vmem:[#allocation2] sm:$0xff]
      %v105 = vmul.f32 %v104, 0.0625
      %106 = vst.msk [vmem:[#allocation6] sm:$0xff] %vm99, %v105
    $region17: #{tpu_custom_call.1} parent=1 // pred_fallthru
      _
    // Predicated region
    $region18: #{tpu_custom_call.1} parent=1 // pred_check
      _
    $region19: #{tpu_custom_call.1} parent=1 // pred_check_branch
      %108 = sbr.rel (0) target = $region21
    $region20: #{tpu_custom_call.1} parent=1 // pred_region
      %110 = vsyncadd [#allocation5], 96
      %s111 = sshll.u32 [#allocation6], 4
      %s112 = int_to_ptr.vmem [resolvable:$true] %s111
      %s113 = sshll.u32 %s1, 4
      %s114 = int_to_ptr.hbm [resolvable:$true] %s113
      %119 = dma.vmem_to_hbm [thread:$0]  %s112, 32, %s114, [#allocation5], 32, 32, 2
    $region21: #{tpu_custom_call.1} parent=1 // pred_fallthru
      _
    // Predicated region
    $region22: #{tpu_custom_call.1} parent=1 // pred_check
      _
    $region23: #{tpu_custom_call.1} parent=1 // pred_check_branch
      %121 = sbr.rel (0) target = $region25
    $region24: #{tpu_custom_call.1} parent=1 // pred_region
      %123 = dma.done [#allocation5], 128
    $region25: #{tpu_custom_call.1} parent=1 // pred_fallthru
      _
    %124 = vsyncpa [#allocation4], 1
    %125 = vsyncpa [#allocation5], 1

</llo_original>
